<compile_context>
chip_gen: v7x
topology: tpu7x:2x2x1
jax: 0.10.0
libtpu: 0.0.40
codegen_flags: <defaults>
</compile_context>

<pallas_src>
import functools

import jax
import jax.numpy as jnp
from jax.experimental import pallas as pl
from jax.experimental.pallas import tpu as pltpu


def _channel_shuffle_kernel(x_ref, o_ref, *, groups, cpg):
  """Permute the channel (sublane) axis of one (1, C, T) tile."""
  channels = groups * cpg
  for k in range(channels):                      # static Python loop
    src = (k % groups) * cpg + (k // groups)     # inverse shuffle index
    o_ref[0, k:k + 1, :] = x_ref[0, src:src + 1, :]


def channel_shuffle_pallas(x, groups, *, max_block_bytes=2 * 1024 * 1024):
  """x: (B, C, H, W).  Returns channel-shuffled (B, C, H, W), same dtype."""
  B, C, H, W = x.shape
  assert C % groups == 0, "channels must be divisible by groups"
  cpg = C // groups
  HW = H * W

  x_flat = x.reshape(B, C, HW)          # free view, no data movement

  itemsize = jnp.dtype(x.dtype).itemsize
  if C * HW * itemsize <= max_block_bytes:
    tile = HW                           # full pixel row per block (lane-dense)
  else:
    tile = max(128, (max_block_bytes // (C * itemsize)) // 128 * 128)
  grid = (B, pl.cdiv(HW, tile))         # ragged tail handled by Pallas masking

  spec = pl.BlockSpec((1, C, tile), lambda b, t: (b, 0, t))

  out_flat = pl.pallas_call(
      functools.partial(_channel_shuffle_kernel, groups=groups, cpg=cpg),
      out_shape=jax.ShapeDtypeStruct((B, C, HW), x.dtype),
      grid=grid,
      in_specs=[spec],
      out_specs=spec,
      compiler_params=pltpu.CompilerParams(
          dimension_semantics=("parallel", "parallel")),
  )(x_flat)

  return out_flat.reshape(B, C, H, W)


def channel_shuffle_ref(x, groups):
  """Pure-JAX reference matching the PyTorch module exactly."""
  B, C, H, W = x.shape
  cpg = C // groups
  y = x.reshape(B, groups, cpg, H, W)
  y = jnp.transpose(y, (0, 2, 1, 3, 4))
  return y.reshape(B, C, H, W)


if __name__ == "__main__":
  key = jax.random.PRNGKey(0)

  # (B, C, H, W), groups — small deterministic configs.
  configs = [((2, 8, 16, 16), 4),
             ((2, 4, 16, 16), 2)]

  ok = True
  for shape, groups in configs:
    key, sub = jax.random.split(key)
    x = jax.random.normal(sub, shape, jnp.float32)
    out = jax.block_until_ready(channel_shuffle_pallas(x, groups))
    ref = channel_shuffle_ref(x, groups)
    ok &= bool(out.shape == shape) and bool(jnp.array_equal(out, ref))

  assert ok, "mismatch vs reference"
  print("KERNEL_OK")
</pallas_src>

<mosaic_0001>
module attributes {stable_mosaic.version = 11 : i64} {
  func.func @_channel_shuffle_kernel(%arg0: i32, %arg1: i32, %arg2: memref<1x8x256xf32, #tpu.memory_space<vmem>>, %arg3: memref<1x8x256xf32, #tpu.memory_space<vmem>>) attributes {dimension_semantics = [#tpu.dimension_semantics<parallel>, #tpu.dimension_semantics<parallel>], iteration_bounds = array<i64: 2, 1>, scalar_prefetch = 0 : i64, scratch_operands = 0 : i64, tpu.core_type = #tpu.core_type<tc>, window_params = [{transform_indices = @transform_0, window_bounds = array<i64: 1, 8, 256>}, {transform_indices = @transform_1, window_bounds = array<i64: 1, 8, 256>}]} {
    %c0 = arith.constant 0 : index
    %c0_0 = arith.constant 0 : index
    %c0_1 = arith.constant 0 : index
    %0 = vector.load %arg2[%c0, %c0_0, %c0_1] : memref<1x8x256xf32, #tpu.memory_space<vmem>>, vector<1x1x256xf32>
    %1 = vector.shape_cast %0 : vector<1x1x256xf32> to vector<1x256xf32>
    %c0_2 = arith.constant 0 : index
    %c0_3 = arith.constant 0 : index
    %c0_4 = arith.constant 0 : index
    %2 = vector.load %arg3[%c0_2, %c0_3, %c0_4] : memref<1x8x256xf32, #tpu.memory_space<vmem>>, vector<1x1x256xf32>
    %3 = vector.shape_cast %2 : vector<1x1x256xf32> to vector<1x256xf32>
    %4 = vector.shape_cast %1 : vector<1x256xf32> to vector<1x1x256xf32>
    tpu.vector_store %arg3[%c0_2, %c0_3, %c0_4], %4 {strides = array<i32>} : memref<1x8x256xf32, #tpu.memory_space<vmem>>, vector<1x1x256xf32>,
    %c0_5 = arith.constant 0 : index
    %c2 = arith.constant 2 : index
    %c0_6 = arith.constant 0 : index
    %5 = vector.load %arg2[%c0_5, %c2, %c0_6] : memref<1x8x256xf32, #tpu.memory_space<vmem>>, vector<1x1x256xf32>
    %6 = vector.shape_cast %5 : vector<1x1x256xf32> to vector<1x256xf32>
    %c0_7 = arith.constant 0 : index
    %c1 = arith.constant 1 : index
    %c0_8 = arith.constant 0 : index
    %7 = vector.load %arg3[%c0_7, %c1, %c0_8] : memref<1x8x256xf32, #tpu.memory_space<vmem>>, vector<1x1x256xf32>
    %8 = vector.shape_cast %7 : vector<1x1x256xf32> to vector<1x256xf32>
    %9 = vector.shape_cast %6 : vector<1x256xf32> to vector<1x1x256xf32>
    tpu.vector_store %arg3[%c0_7, %c1, %c0_8], %9 {strides = array<i32>} : memref<1x8x256xf32, #tpu.memory_space<vmem>>, vector<1x1x256xf32>,
    %c0_9 = arith.constant 0 : index
    %c4 = arith.constant 4 : index
    %c0_10 = arith.constant 0 : index
    %10 = vector.load %arg2[%c0_9, %c4, %c0_10] : memref<1x8x256xf32, #tpu.memory_space<vmem>>, vector<1x1x256xf32>
    %11 = vector.shape_cast %10 : vector<1x1x256xf32> to vector<1x256xf32>
    %c0_11 = arith.constant 0 : index
    %c2_12 = arith.constant 2 : index
    %c0_13 = arith.constant 0 : index
    %12 = vector.load %arg3[%c0_11, %c2_12, %c0_13] : memref<1x8x256xf32, #tpu.memory_space<vmem>>, vector<1x1x256xf32>
    %13 = vector.shape_cast %12 : vector<1x1x256xf32> to vector<1x256xf32>
    %14 = vector.shape_cast %11 : vector<1x256xf32> to vector<1x1x256xf32>
    tpu.vector_store %arg3[%c0_11, %c2_12, %c0_13], %14 {strides = array<i32>} : memref<1x8x256xf32, #tpu.memory_space<vmem>>, vector<1x1x256xf32>,
    %c0_14 = arith.constant 0 : index
    %c6 = arith.constant 6 : index
    %c0_15 = arith.constant 0 : index
    %15 = vector.load %arg2[%c0_14, %c6, %c0_15] : memref<1x8x256xf32, #tpu.memory_space<vmem>>, vector<1x1x256xf32>
    %16 = vector.shape_cast %15 : vector<1x1x256xf32> to vector<1x256xf32>
    %c0_16 = arith.constant 0 : index
    %c3 = arith.constant 3 : index
    %c0_17 = arith.constant 0 : index
    %17 = vector.load %arg3[%c0_16, %c3, %c0_17] : memref<1x8x256xf32, #tpu.memory_space<vmem>>, vector<1x1x256xf32>
    %18 = vector.shape_cast %17 : vector<1x1x256xf32> to vector<1x256xf32>
    %19 = vector.shape_cast %16 : vector<1x256xf32> to vector<1x1x256xf32>
    tpu.vector_store %arg3[%c0_16, %c3, %c0_17], %19 {strides = array<i32>} : memref<1x8x256xf32, #tpu.memory_space<vmem>>, vector<1x1x256xf32>,
    %c0_18 = arith.constant 0 : index
    %c1_19 = arith.constant 1 : index
    %c0_20 = arith.constant 0 : index
    %20 = vector.load %arg2[%c0_18, %c1_19, %c0_20] : memref<1x8x256xf32, #tpu.memory_space<vmem>>, vector<1x1x256xf32>
    %21 = vector.shape_cast %20 : vector<1x1x256xf32> to vector<1x256xf32>
    %c0_21 = arith.constant 0 : index
    %c4_22 = arith.constant 4 : index
    %c0_23 = arith.constant 0 : index
    %22 = vector.load %arg3[%c0_21, %c4_22, %c0_23] : memref<1x8x256xf32, #tpu.memory_space<vmem>>, vector<1x1x256xf32>
    %23 = vector.shape_cast %22 : vector<1x1x256xf32> to vector<1x256xf32>
    %24 = vector.shape_cast %21 : vector<1x256xf32> to vector<1x1x256xf32>
    tpu.vector_store %arg3[%c0_21, %c4_22, %c0_23], %24 {strides = array<i32>} : memref<1x8x256xf32, #tpu.memory_space<vmem>>, vector<1x1x256xf32>,
    %c0_24 = arith.constant 0 : index
    %c3_25 = arith.constant 3 : index
    %c0_26 = arith.constant 0 : index
    %25 = vector.load %arg2[%c0_24, %c3_25, %c0_26] : memref<1x8x256xf32, #tpu.memory_space<vmem>>, vector<1x1x256xf32>
    %26 = vector.shape_cast %25 : vector<1x1x256xf32> to vector<1x256xf32>
    %c0_27 = arith.constant 0 : index
    %c5 = arith.constant 5 : index
    %c0_28 = arith.constant 0 : index
    %27 = vector.load %arg3[%c0_27, %c5, %c0_28] : memref<1x8x256xf32, #tpu.memory_space<vmem>>, vector<1x1x256xf32>
    %28 = vector.shape_cast %27 : vector<1x1x256xf32> to vector<1x256xf32>
    %29 = vector.shape_cast %26 : vector<1x256xf32> to vector<1x1x256xf32>
    tpu.vector_store %arg3[%c0_27, %c5, %c0_28], %29 {strides = array<i32>} : memref<1x8x256xf32, #tpu.memory_space<vmem>>, vector<1x1x256xf32>,
    %c0_29 = arith.constant 0 : index
    %c5_30 = arith.constant 5 : index
    %c0_31 = arith.constant 0 : index
    %30 = vector.load %arg2[%c0_29, %c5_30, %c0_31] : memref<1x8x256xf32, #tpu.memory_space<vmem>>, vector<1x1x256xf32>
    %31 = vector.shape_cast %30 : vector<1x1x256xf32> to vector<1x256xf32>
    %c0_32 = arith.constant 0 : index
    %c6_33 = arith.constant 6 : index
    %c0_34 = arith.constant 0 : index
    %32 = vector.load %arg3[%c0_32, %c6_33, %c0_34] : memref<1x8x256xf32, #tpu.memory_space<vmem>>, vector<1x1x256xf32>
    %33 = vector.shape_cast %32 : vector<1x1x256xf32> to vector<1x256xf32>
    %34 = vector.shape_cast %31 : vector<1x256xf32> to vector<1x1x256xf32>
    tpu.vector_store %arg3[%c0_32, %c6_33, %c0_34], %34 {strides = array<i32>} : memref<1x8x256xf32, #tpu.memory_space<vmem>>, vector<1x1x256xf32>,
    %c0_35 = arith.constant 0 : index
    %c7 = arith.constant 7 : index
    %c0_36 = arith.constant 0 : index
    %35 = vector.load %arg2[%c0_35, %c7, %c0_36] : memref<1x8x256xf32, #tpu.memory_space<vmem>>, vector<1x1x256xf32>
    %36 = vector.shape_cast %35 : vector<1x1x256xf32> to vector<1x256xf32>
    %c0_37 = arith.constant 0 : index
    %c7_38 = arith.constant 7 : index
    %c0_39 = arith.constant 0 : index
    %37 = vector.load %arg3[%c0_37, %c7_38, %c0_39] : memref<1x8x256xf32, #tpu.memory_space<vmem>>, vector<1x1x256xf32>
    %38 = vector.shape_cast %37 : vector<1x1x256xf32> to vector<1x256xf32>
    %39 = vector.shape_cast %36 : vector<1x256xf32> to vector<1x1x256xf32>
    tpu.vector_store %arg3[%c0_37, %c7_38, %c0_39], %39 {strides = array<i32>} : memref<1x8x256xf32, #tpu.memory_space<vmem>>, vector<1x1x256xf32>,
    return
  }
  func.func @transform_0(%arg0: i32, %arg1: i32) -> (i32, i32, i32) {
    %c0_i32 = arith.constant 0 : i32
    %c0_i32_0 = arith.constant 0 : i32
    return %arg0, %c0_i32, %arg1 : i32, i32, i32
  }
  func.func @transform_1(%arg0: i32, %arg1: i32) -> (i32, i32, i32) {
    %c0_i32 = arith.constant 0 : i32
    %c0_i32_0 = arith.constant 0 : i32
    return %arg0, %c0_i32, %arg1 : i32, i32, i32
  }
}

</mosaic_0001>

<llo_original>
// kernel: tpu_custom_call.1
$region0: #{tpu_custom_call.1}
  #allocation0 [shape = 'u32[]', space=smem, size = 0x4, offset = 0x4, fixed_abs, tag = 'smem constant byte address 0x4 - core index']
  #allocation1 [shape = 'u32[144,128]{1,0:T(1,128)}', space=vmem, size = 0x12000, scoped, tag = 'internal scratch']
  %s0 = inlined_call_operand.hbm [shape: f32[2,8,256], index: 0, kind: input, shape index: {}]
  %s1 = inlined_call_operand.hbm [shape: f32[2,8,256], index: 1, kind: output, shape index: {}]
  %s2 = sld [smem:[#allocation0]]
  $region41: #{tpu_custom_call.1} parent=0
    _
  %s4 = ssub.s32 1, %s2
  %s5 = scalar_select 0, %s4, %s2
  $region1: #{tpu_custom_call.1} parent=0
    #allocation2 [shape = 'u8[16384]{0}', space=vmem, size = 0x4000, scoped, tag = 'input window, operand 0']
    #allocation3 [shape = 's32[2]{0}', space=sflag, size = 0x8, scoped, tag = 'scoped memory for tpu_custom_call.1']
    #allocation4 [shape = 's32[2]{0}', space=sflag, size = 0x8, scoped, tag = 'scoped memory for tpu_custom_call.1']
    #allocation5 [shape = 'u8[16384]{0}', space=vmem, size = 0x4000, scoped, tag = 'output window, operand 0']
    %6 = vsyncpa [#allocation3], 0
    %s7 = scalar_lea.sflag [#allocation3], 1
    %8 = vsyncpa %s7, 0
    %9 = vsyncpa [#allocation4], 0
    %s10 = scalar_lea.sflag [#allocation4], 1
    %11 = vsyncpa %s10, 0
    loop: start=0, step=1, limit=4
    $region2: #{tpu_custom_call.1} parent=1 // loop_pre_header
      _
    $region3: #{tpu_custom_call.1} parent=1 // loop_header
      %s13 = sphi 0, %s17
      %p14 = scmp.ge.s32.totalorder %s13, 4
      %s20 = sphi 0, %s32
      %s21 = sphi 0, %s28
      %s22 = sphi 0, %s20
      %s23 = sphi 0, %s21
      %s24 = sphi 0, %s22
      %s25 = sphi 0, %s23
      %s37 = sphi 0, %s39
      %s40 = sphi 0, %s37
      %s41 = sphi 0, %s40
      %s57 = sphi 0, %s41
      %s65 = sphi 0, %s67
      %s68 = sphi 0, %s65
      %s69 = sphi 0, %s68
      %s85 = sphi 0, %s69
    $region4: #{tpu_custom_call.1} parent=1 // loop_header_branch
      %16 = sbr.rel (%p14) target = $region8
    $region5: #{tpu_custom_call.1} parent=1 // loop_body
      %s18 = ssub.s32 %s13, 1
      %s19 = ssub.s32 %s13, 2
      %s26 = sadd.s32 1, %s21
      %p27 = scmp.ge.s32.totalorder %s26, 1
      %s28 = scalar_select %p27, 0, %s26
      %s29 = sadd.s32 1, %s20
      %s30 = scalar_select %p27, %s29, %s20
      %p31 = scmp.ge.s32.totalorder %s30, 2
      %s32 = scalar_select %p31, 0, %s30
      %s33 = ssub.s32 %s20, %s32
      %s34 = ssub.s32 %s21, %s28
      %s35 = sor.u32 %s33, %s34
      %p36 = scmp.eq.s32.totalorder %s35, 0
      %s38 = sadd.s32 %s37, 1
      %s39 = scalar_select %p36, %s37, %s38
      %p42 = pneg %p36
      %p43 = scmp.eq.s32.totalorder %s13, 1
      %p44 = por %p42, %p43
      %p45 = scmp.ne.s32.totalorder %s37, %s40
      %p46 = scmp.eq.s32.totalorder %s13, 0
      %p47 = por %p45, %p46
      %p48 = scmp.ne.s32.totalorder %s37, %s40
      %p49 = scmp.eq.s32.totalorder %s18, 1
      %p50 = por %p48, %p49
      %p51 = scmp.ne.s32.totalorder %s40, %s41
      %p52 = scmp.eq.s32.totalorder %s18, 0
      %p53 = por %p51, %p52
      %p54 = scmp.ne.s32.totalorder %s40, %s41
      %p55 = scmp.eq.s32.totalorder %s19, 1
      %p56 = por %p54, %p55
      %p58 = scmp.ne.s32.totalorder %s41, %s57
      %p59 = scmp.eq.s32.totalorder %s19, 0
      %p60 = por %p58, %p59
      %s61 = ssub.s32 %s20, %s32
      %s62 = ssub.s32 %s21, %s28
      %s63 = sor.u32 %s61, %s62
      %p64 = scmp.eq.s32.totalorder %s63, 0
      %s66 = sadd.s32 %s65, 1
      %s67 = scalar_select %p64, %s65, %s66
      %p70 = pneg %p64
      %p71 = scmp.eq.s32.totalorder %s13, 1
      %p72 = por %p70, %p71
      %p73 = scmp.ne.s32.totalorder %s65, %s68
      %p74 = scmp.eq.s32.totalorder %s13, 0
      %p75 = por %p73, %p74
      %p76 = scmp.ne.s32.totalorder %s65, %s68
      %p77 = scmp.eq.s32.totalorder %s18, 1
      %p78 = por %p76, %p77
      %p79 = scmp.ne.s32.totalorder %s68, %s69
      %p80 = scmp.eq.s32.totalorder %s18, 0
      %p81 = por %p79, %p80
      %p82 = scmp.ne.s32.totalorder %s68, %s69
      %p83 = scmp.eq.s32.totalorder %s19, 1
      %p84 = por %p82, %p83
      %p86 = scmp.ne.s32.totalorder %s69, %s85
      %p87 = scmp.eq.s32.totalorder %s19, 0
      %p88 = por %p86, %p87
      %p89 = scmp.le.s32.totalorder 1, %s13
      %p90 = scmp.lt.s32.totalorder %s13, 3
      %p91 = pnand %p89, %p90
      %p92 = pneg %p91
      // Predicated region
      $region9: #{tpu_custom_call.1} parent=5 // pred_check
        _
      $region10: #{tpu_custom_call.1} parent=5 // pred_check_branch
        %94 = sbr.rel (%p91) target = $region12
      $region11: #{tpu_custom_call.1} parent=5 // pred_region
        %s95 = ssub.s32 %s13, 1
      $region12: #{tpu_custom_call.1} parent=5 // pred_fallthru
        _
      %p96 = scmp.lt.s32.totalorder %s13, 2
      // Predicated region
      $region13: #{tpu_custom_call.1} parent=5 // pred_check
        %p97 = pneg %p96
      $region14: #{tpu_custom_call.1} parent=5 // pred_check_branch
        %99 = sbr.rel (%p97) target = $region16
      $region15: #{tpu_custom_call.1} parent=5 // pred_region
        // Predicated region
        $region17: #{tpu_custom_call.1} parent=15 // pred_check
          %p100 = pneg %p47
        $region18: #{tpu_custom_call.1} parent=15 // pred_check_branch
          %102 = sbr.rel (%p100) target = $region20
        $region19: #{tpu_custom_call.1} parent=15 // pred_region
          %s103 = sand.u32 %s37, 1
          %s104 = scalar_lea.sflag [#allocation3], %s103
          %s105 = sand.u32 %s37, 1
          %s106 = smul.addr %s105, 16
          %s107 = scalar_lea.vmem [#allocation2], %s106
          %s108 = smul.u32 2, %s21
          %s110 = ssub.s32 256, 256
          %111 = vsyncadd %s104, %s110
          %s112 = smul.addr %s20, 2
          %s113 = sadd.s32 %s108, %s112
          %s114 = smul.addr %s113, 128
          %s115 = scalar_lea.hbm %s0, %s114
          %s117 = sshll.u32 %s107, 4
          %s118 = int_to_ptr.vmem [resolvable:$true] %s117
          %120 = dma.hbm_to_vmem [thread:$0]  %s115, 256, %s118, %s104
        $region20: #{tpu_custom_call.1} parent=15 // pred_fallthru
          _
      $region16: #{tpu_custom_call.1} parent=5 // pred_fallthru
        _
      %p121 = scmp.le.s32.totalorder 1, %s13
      %p122 = scmp.lt.s32.totalorder %s13, 3
      %p123 = pnand %p121, %p122
      %p124 = pneg %p123
      // Predicated region
      $region21: #{tpu_custom_call.1} parent=5 // pred_check
        _
      $region22: #{tpu_custom_call.1} parent=5 // pred_check_branch
        %126 = sbr.rel (%p123) target = $region24
      $region23: #{tpu_custom_call.1} parent=5 // pred_region
        %s127 = ssub.s32 %s13, 1
        %s128 = sand.u32 %s40, 1
        %s129 = scalar_lea.sflag [#allocation3], %s128
        %s130 = sand.u32 %s40, 1
        %s131 = smul.addr %s130, 16
        %s132 = scalar_lea.vmem [#allocation2], %s131
        // Predicated region
        $region25: #{tpu_custom_call.1} parent=23 // pred_check
          %p133 = pneg %p53
        $region26: #{tpu_custom_call.1} parent=23 // pred_check_branch
          %135 = sbr.rel (%p133) target = $region28
        $region27: #{tpu_custom_call.1} parent=23 // pred_region
          %136 = dma.done %s129, 256
        $region28: #{tpu_custom_call.1} parent=23 // pred_fallthru
          _
        %s137 = sand.u32 %s40, 1
        %s138 = scalar_lea.sflag [#allocation3], %s137
        %s139 = sand.u32 %s40, 1
        %s140 = smul.addr %s139, 16
        %s141 = scalar_lea.vmem [#allocation2], %s140
        %p142 = pneg %p53
        %p143 = pneg %p50
        %p144 = pneg %p81
        %p145 = pneg %p78
        %s146 = sand.u32 %s68, 1
        %s147 = scalar_lea.sflag [#allocation4], %s146
        %s148 = sand.u32 %s68, 1
        %s149 = smul.addr %s148, 16
        %s150 = scalar_lea.vmem [#allocation5], %s149
        %s151 = smul.u32 2, %s23
        %s152 = smul.u32 2, %s23
        %v153 = vld [vmem:[%s132] ss:$8 sm:$0x3]
        %v154 = vlaneseq
        %vm155 = vcmp.ge.s32.totalorder %v154, 0
        %vm156 = vcmp.lt.s32.totalorder %v154, 256
        %vm157 = vmand %vm155, %vm156
        %158 = vst.msk [vmem:[%s150] ss:$8 sm:$0x3] %vm157, %v153
        %159 = vst.msk [vmem:[%s150] ss:$8 sm:$0x0] %vm157, %v153
        %s160 = scalar_lea.vmem %s132, 2 [#allocation2]
        %v161 = vld [vmem:[%s160] ss:$8 sm:$0x3]
        %s162 = scalar_lea.vmem %s150, 1 [#allocation5]
        %163 = vst.msk [vmem:[%s162] ss:$8 sm:$0x3] %vm157, %v161
        %164 = vst.msk [vmem:[%s162] ss:$8 sm:$0x0] %vm157, %v161
        %s165 = scalar_lea.vmem %s132, 4 [#allocation2]
        %v166 = vld [vmem:[%s165] ss:$8 sm:$0x3]
        %s167 = scalar_lea.vmem %s150, 2 [#allocation5]
        %168 = vst.msk [vmem:[%s167] ss:$8 sm:$0x3] %vm157, %v166
        %169 = vst.msk [vmem:[%s167] ss:$8 sm:$0x0] %vm157, %v166
        %s170 = scalar_lea.vmem %s132, 6 [#allocation2]
        %v171 = vld [vmem:[%s170] ss:$8 sm:$0x3]
        %s172 = scalar_lea.vmem %s150, 3 [#allocation5]
        %173 = vst.msk [vmem:[%s172] ss:$8 sm:$0x3] %vm157, %v171
        %174 = vst.msk [vmem:[%s172] ss:$8 sm:$0x0] %vm157, %v171
        %s175 = scalar_lea.vmem %s132, 1 [#allocation2]
        %v176 = vld [vmem:[%s175] ss:$8 sm:$0x3]
        %s177 = scalar_lea.vmem %s150, 4 [#allocation5]
        %178 = vst.msk [vmem:[%s177] ss:$8 sm:$0x3] %vm157, %v176
        %179 = vst.msk [vmem:[%s177] ss:$8 sm:$0x0] %vm157, %v176
        %s180 = scalar_lea.vmem %s132, 3 [#allocation2]
        %v181 = vld [vmem:[%s180] ss:$8 sm:$0x3]
        %s182 = scalar_lea.vmem %s150, 5 [#allocation5]
        %183 = vst.msk [vmem:[%s182] ss:$8 sm:$0x3] %vm157, %v181
        %184 = vst.msk [vmem:[%s182] ss:$8 sm:$0x0] %vm157, %v181
        %s185 = scalar_lea.vmem %s132, 5 [#allocation2]
        %v186 = vld [vmem:[%s185] ss:$8 sm:$0x3]
        %s187 = scalar_lea.vmem %s150, 6 [#allocation5]
        %188 = vst.msk [vmem:[%s187] ss:$8 sm:$0x3] %vm157, %v186
        %189 = vst.msk [vmem:[%s187] ss:$8 sm:$0x0] %vm157, %v186
        %s190 = scalar_lea.vmem %s132, 7 [#allocation2]
        %v191 = vld [vmem:[%s190] ss:$8 sm:$0x3]
        %s192 = scalar_lea.vmem %s150, 7 [#allocation5]
        %193 = vst.msk [vmem:[%s192] ss:$8 sm:$0x3] %vm157, %v191
        %194 = vst.msk [vmem:[%s192] ss:$8 sm:$0x0] %vm157, %v191
        %s195 = sand.u32 %s68, 1
        %s196 = scalar_lea.sflag [#allocation4], %s195
        %s197 = sand.u32 %s68, 1
        %s198 = smul.addr %s197, 16
        %s199 = scalar_lea.vmem [#allocation5], %s198
        // Predicated region
        $region29: #{tpu_custom_call.1} parent=23 // pred_check
          %p200 = pneg %p78
        $region30: #{tpu_custom_call.1} parent=23 // pred_check_branch
          %202 = sbr.rel (%p200) target = $region32
        $region31: #{tpu_custom_call.1} parent=23 // pred_region
          %s203 = smul.u32 2, %s23
          %s205 = ssub.s32 256, 256
          %206 = vsyncadd %s196, %s205
          %s207 = smul.addr %s22, 2
          %s208 = sadd.s32 %s203, %s207
          %s209 = smul.addr %s208, 128
          %s210 = scalar_lea.hbm %s1, %s209
          %s212 = sshll.u32 %s199, 4
          %s213 = int_to_ptr.vmem [resolvable:$true] %s212
          %215 = dma.vmem_to_hbm [thread:$0]  %s213, 256, %s210, %s196
        $region32: #{tpu_custom_call.1} parent=23 // pred_fallthru
          _
      $region24: #{tpu_custom_call.1} parent=5 // pred_fallthru
        _
      %p216 = scmp.le.s32.totalorder 2, %s13
      // Predicated region
      $region33: #{tpu_custom_call.1} parent=5 // pred_check
        %p217 = pneg %p216
      $region34: #{tpu_custom_call.1} parent=5 // pred_check_branch
        %219 = sbr.rel (%p217) target = $region36
      $region35: #{tpu_custom_call.1} parent=5 // pred_region
        %s220 = ssub.s32 %s13, 2
        // Predicated region
        $region37: #{tpu_custom_call.1} parent=35 // pred_check
          %p221 = pneg %p84
        $region38: #{tpu_custom_call.1} parent=35 // pred_check_branch
          %223 = sbr.rel (%p221) target = $region40
        $region39: #{tpu_custom_call.1} parent=35 // pred_region
          %s224 = sand.u32 %s69, 1
          %s225 = scalar_lea.sflag [#allocation4], %s224
          %s226 = sand.u32 %s69, 1
          %s227 = smul.addr %s226, 16
          %s228 = scalar_lea.vmem [#allocation5], %s227
          %229 = dma.done %s225, 256
        $region40: #{tpu_custom_call.1} parent=35 // pred_fallthru
          _
      $region36: #{tpu_custom_call.1} parent=5 // pred_fallthru
        _
    $region6: #{tpu_custom_call.1} parent=1 // loop_footer
      %s17 = sadd.s32 1, %s13
    $region7: #{tpu_custom_call.1} parent=1 // loop_footer_branch
      %12 = sbr.rel target = $region3
    $region8: #{tpu_custom_call.1} parent=1 // loop_exit
      _
    %230 = vsyncpa [#allocation3], 1
    %s231 = scalar_lea.sflag [#allocation3], 1
    %232 = vsyncpa %s231, 1
    %233 = vsyncpa [#allocation4], 1
    %s234 = scalar_lea.sflag [#allocation4], 1
    %235 = vsyncpa %s234, 1

</llo_original>
